<compile_context>
chip_gen: v7x
topology: tpu7x:2x2x1
jax: 0.10.0
libtpu: 0.0.40
codegen_flags: <defaults>
</compile_context>

<pallas_src>
import functools

import jax
import jax.numpy as jnp
from jax import lax
from jax.experimental import pallas as pl
from jax.experimental.pallas import tpu as pltpu


def _silu(x):
    return x * jax.nn.sigmoid(x)


def _shift_flat(h, off, hw):
    """s[:, k] = h[:, k + off] when 0 <= k + off < hw, else 0 (zero padding)."""
    if off == 0:
        return h
    fill = jnp.zeros((h.shape[0], abs(off)), h.dtype)
    if off > 0:
        return jnp.concatenate([h[:, off:], fill], axis=1)
    return jnp.concatenate([fill, h[:, : hw + off]], axis=1)


def bottleneck_kernel(x_ref, w1_ref, b1_ref, w2_ref, b2_ref, o_ref,
                      *, H, W, use_add, compute_dtype):
    HW = H * W
    x = x_ref[0]                                             # (Cin, HW) compute_dtype

    # ---- conv1 (1x1): BN scale pre-folded into w1; bias + SiLU in f32 ----
    h = jnp.dot(w1_ref[...], x, preferred_element_type=jnp.float32)   # (Ch, HW) f32
    h = _silu(h + b1_ref[...])
    h = h.astype(compute_dtype)          # single rounding point before im2col

    # Column index (j = k mod W) of every flattened output pixel, as 0/1 masks
    # for the left / right taps of the 3x3 window.
    col = lax.broadcasted_iota(jnp.int32, (1, HW), 1) % W
    mask_l = (col >= 1).astype(compute_dtype)                # valid when dj == 0
    mask_r = (col < (W - 1)).astype(compute_dtype)           # valid when dj == 2

    # Column-shifted (dj) copies, masked once each.  The masks depend only on
    # the output column, which is invariant under whole-row (+-W) shifts, so
    # the three row shifts below can reuse them directly.
    h_cols = (
        _shift_flat(h, -1, HW) * mask_l,                     # dj = 0
        h,                                                   # dj = 1
        _shift_flat(h, +1, HW) * mask_r,                     # dj = 2
    )

    # ---- conv2 (3x3, pad=1) as ONE im2col matmul ----
    # Row-major flattening: spatial shift (di-1, dj-1) == flat shift
    # (di-1)*W + (dj-1); zero-fill of the row shift covers the top/bottom
    # boundary exactly, the column mask covers left/right.
    taps = []
    for di in range(3):
        for dj in range(3):
            taps.append(_shift_flat(h_cols[dj], (di - 1) * W, HW))
    patch = jnp.concatenate(taps, axis=0)                    # (9*Ch, HW) compute_dtype

    y = jnp.dot(w2_ref[...], patch, preferred_element_type=jnp.float32)  # (Cout, HW)
    y = _silu(y + b2_ref[...])

    if use_add:
        y = y + x.astype(jnp.float32)                        # residual (Cin == Cout)

    o_ref[0] = y.astype(o_ref.dtype)                         # lane-dense (HW) store


def bottleneck_forward(x_nchw, params, *, use_add, compute_dtype=jnp.bfloat16):
    """x_nchw: (N, Cin, H, W) float32. Returns (N, Cout, H, W) float32."""
    w1, b1, w2, b2 = params        # w1:(Ch,Cin)  b1:(Ch,1)  w2:(Cout,9*Ch)  b2:(Cout,1)
    N, Cin, H, W = x_nchw.shape
    Ch = w1.shape[0]
    Cout = w2.shape[0]
    HW = H * W

    # NCHW is already the lane-dense layout we want: flatten the spatial dims
    # onto the lane axis (free reshape, no transpose).
    x_flat = x_nchw.reshape(N, Cin, HW).astype(compute_dtype)
    w1c = w1.astype(compute_dtype)
    w2c = w2.astype(compute_dtype)

    kernel = functools.partial(bottleneck_kernel, H=H, W=W,
                               use_add=use_add, compute_dtype=compute_dtype)

    out_flat = pl.pallas_call(
        kernel,
        out_shape=jax.ShapeDtypeStruct((N, Cout, HW), jnp.float32),
        grid=(N,),
        in_specs=[
            pl.BlockSpec((1, Cin, HW), lambda n: (n, 0, 0)),
            pl.BlockSpec((Ch, Cin), lambda n: (0, 0)),
            pl.BlockSpec((Ch, 1), lambda n: (0, 0)),
            pl.BlockSpec((Cout, 9 * Ch), lambda n: (0, 0)),
            pl.BlockSpec((Cout, 1), lambda n: (0, 0)),
        ],
        out_specs=pl.BlockSpec((1, Cout, HW), lambda n: (n, 0, 0)),
        compiler_params=pltpu.CompilerParams(
            dimension_semantics=("parallel",)),
    )(x_flat, w1c, b1, w2c, b2)

    return out_flat.reshape(N, Cout, H, W)


def make_params(key, in_channels, out_channels, expansion=0.5, eps=1e-5):
    """Deterministic synthetic weights; eval-mode BatchNorm folded into the
    conv weights (scale) and a per-channel bias."""
    hidden = int(out_channels * expansion)
    k = jax.random.split(key, 10)

    # conv1: 1x1, torch weight (hidden, Cin, 1, 1)
    w1_t = jax.random.normal(k[0], (hidden, in_channels, 1, 1), jnp.float32) * 0.2
    g1 = 1.0 + 0.1 * jax.random.normal(k[1], (hidden,), jnp.float32)
    be1 = 0.1 * jax.random.normal(k[2], (hidden,), jnp.float32)
    rm1 = 0.1 * jax.random.normal(k[3], (hidden,), jnp.float32)
    rv1 = jnp.abs(jax.random.normal(k[4], (hidden,), jnp.float32)) + 0.5

    # conv2: 3x3, torch weight (Cout, hidden, 3, 3)
    w2_t = jax.random.normal(k[5], (out_channels, hidden, 3, 3), jnp.float32) * 0.2
    g2 = 1.0 + 0.1 * jax.random.normal(k[6], (out_channels,), jnp.float32)
    be2 = 0.1 * jax.random.normal(k[7], (out_channels,), jnp.float32)
    rm2 = 0.1 * jax.random.normal(k[8], (out_channels,), jnp.float32)
    rv2 = jnp.abs(jax.random.normal(k[9], (out_channels,), jnp.float32)) + 0.5

    # eval-mode BN: y = conv * s + b  (exact to fold s into the conv weight)
    s1 = g1 / jnp.sqrt(rv1 + eps)
    b1 = be1 - rm1 * s1
    s2 = g2 / jnp.sqrt(rv2 + eps)
    b2 = be2 - rm2 * s2

    w1 = w1_t[:, :, 0, 0] * s1[:, None]                              # (Ch, Cin)
    # (Cout, Ch, kh, kw) -> (Cout, kh, kw, Ch) -> (Cout, 9*Ch); tap = kh*3 + kw
    w2 = jnp.transpose(w2_t, (0, 2, 3, 1)).reshape(out_channels, 9 * hidden)
    w2 = w2 * s2[:, None]

    return (w1, b1[:, None], w2, b2[:, None])


def reference_forward(x_nchw, params, *, use_add, compute_dtype):
    """Pure-JAX reference via lax.conv (NCHW), using the same rounded operands
    as the kernel so the comparison stays tight."""
    w1, b1, w2, b2 = params
    Ch, Cin = w1.shape
    Cout = w2.shape[0]

    def rnd(a):
        return a.astype(compute_dtype).astype(jnp.float32)

    xr = rnd(x_nchw)
    w1c = rnd(w1).reshape(Ch, Cin, 1, 1)
    w2c = jnp.transpose(rnd(w2).reshape(Cout, 3, 3, Ch), (0, 3, 1, 2))   # OIHW

    dn = ('NCHW', 'OIHW', 'NCHW')
    h = lax.conv_general_dilated(xr, w1c, (1, 1), 'VALID',
                                 dimension_numbers=dn,
                                 precision=lax.Precision.HIGHEST)
    h = _silu(h + b1.reshape(1, Ch, 1, 1))
    y = lax.conv_general_dilated(rnd(h), w2c, (1, 1), ((1, 1), (1, 1)),
                                 dimension_numbers=dn,
                                 precision=lax.Precision.HIGHEST)
    y = _silu(y + b2.reshape(1, Cout, 1, 1))
    if use_add:
        y = y + xr
    return y


if __name__ == "__main__":
    key = jax.random.PRNGKey(0)
    kx, kp = jax.random.split(key)

    N, Cin, H, W = 2, 4, 16, 16
    Cout = 4
    shortcut = True
    use_add = shortcut and (Cin == Cout)

    x = jax.random.normal(kx, (N, Cin, H, W), jnp.float32)
    params = make_params(kp, Cin, Cout, expansion=0.5)

    y = bottleneck_forward(x, params, use_add=use_add)
    y = jax.block_until_ready(y)

    y_ref = reference_forward(x, params, use_add=use_add,
                              compute_dtype=jnp.bfloat16)
    assert y.shape == (N, Cout, H, W)
    max_err = float(jnp.max(jnp.abs(y - y_ref)))
    assert jnp.allclose(y, y_ref, atol=2e-2, rtol=2e-2), max_err

    print("KERNEL_OK")
</pallas_src>

<mosaic_0001>
module attributes {stable_mosaic.version = 11 : i64} {
  func.func @bottleneck_kernel(%arg0: i32, %arg1: memref<1x4x256xbf16, #tpu.memory_space<vmem>>, %arg2: memref<2x4xbf16, #tpu.memory_space<vmem>>, %arg3: memref<2x1xf32, #tpu.memory_space<vmem>>, %arg4: memref<4x18xbf16, #tpu.memory_space<vmem>>, %arg5: memref<4x1xf32, #tpu.memory_space<vmem>>, %arg6: memref<1x4x256xf32, #tpu.memory_space<vmem>>) attributes {dimension_semantics = [#tpu.dimension_semantics<parallel>], iteration_bounds = array<i64: 2>, scalar_prefetch = 0 : i64, scratch_operands = 0 : i64, tpu.core_type = #tpu.core_type<tc>, window_params = [{transform_indices = @transform_0, window_bounds = array<i64: 1, 4, 256>}, {pipeline_mode = #tpu.pipeline_mode<synchronous>, transform_indices = @transform_1, window_bounds = array<i64: 2, 4>}, {pipeline_mode = #tpu.pipeline_mode<synchronous>, transform_indices = @transform_2, window_bounds = array<i64: 2, 1>}, {pipeline_mode = #tpu.pipeline_mode<synchronous>, transform_indices = @transform_3, window_bounds = array<i64: 4, 18>}, {pipeline_mode = #tpu.pipeline_mode<synchronous>, transform_indices = @transform_4, window_bounds = array<i64: 4, 1>}, {transform_indices = @transform_5, window_bounds = array<i64: 1, 4, 256>}]} {
    %c0 = arith.constant 0 : index
    %c0_0 = arith.constant 0 : index
    %c0_1 = arith.constant 0 : index
    %0 = vector.load %arg1[%c0, %c0_0, %c0_1] : memref<1x4x256xbf16, #tpu.memory_space<vmem>>, vector<1x4x256xbf16>
    %1 = vector.shape_cast %0 : vector<1x4x256xbf16> to vector<4x256xbf16>
    %c0_2 = arith.constant 0 : index
    %c0_3 = arith.constant 0 : index
    %2 = vector.load %arg2[%c0_2, %c0_3] : memref<2x4xbf16, #tpu.memory_space<vmem>>, vector<2x4xbf16>
    %cst = arith.constant dense<0.000000e+00> : vector<2x256xf32>
    %3 = tpu.matmul %2, %1, %cst {dimension_numbers = #tpu.dot_dimension_numbers<[1], [0], [0], [1], [0, 0, 1, 1], [], []>} : vector<2x4xbf16>, vector<4x256xbf16>, vector<2x256xf32> -> vector<2x256xf32>
    %c0_4 = arith.constant 0 : index
    %c0_5 = arith.constant 0 : index
    %4 = vector.load %arg3[%c0_4, %c0_5] : memref<2x1xf32, #tpu.memory_space<vmem>>, vector<2x1xf32>
    %5 = vector.broadcast %4 : vector<2x1xf32> to vector<2x256xf32>
    %6 = arith.addf %3, %5 : vector<2x256xf32>
    %7 = arith.negf %6 : vector<2x256xf32>
    %8 = math.exp %7 : vector<2x256xf32>
    %cst_6 = arith.constant 1.000000e+00 : f32
    %9 = vector.broadcast %cst_6 : f32 to vector<2x256xf32>
    %10 = arith.addf %9, %8 : vector<2x256xf32>
    %11 = arith.divf %9, %10 : vector<2x256xf32>
    %12 = arith.mulf %6, %11 : vector<2x256xf32>
    %13 = arith.truncf %12 : vector<2x256xf32> to vector<2x256xbf16>
    %14 = tpu.iota {dimensions = array<i32: 1>} : vector<1x256xi32>
    %c16_i32 = arith.constant 16 : i32
    %c0_i32 = arith.constant 0 : i32
    %15 = arith.cmpi eq, %c16_i32, %c0_i32 : i32
    %c1_i32 = arith.constant 1 : i32
    %16 = arith.select %15, %c1_i32, %c16_i32 : i32
    %17 = vector.broadcast %16 : i32 to vector<1x256xi32>
    %18 = arith.remsi %14, %17 : vector<1x256xi32>
    %c0_i32_7 = arith.constant 0 : i32
    %19 = vector.broadcast %c0_i32_7 : i32 to vector<1x256xi32>
    %20 = arith.cmpi ne, %18, %19 : vector<1x256xi32>
    %c0_i32_8 = arith.constant 0 : i32
    %21 = vector.broadcast %c0_i32_8 : i32 to vector<1x256xi32>
    %22 = arith.cmpi slt, %18, %21 : vector<1x256xi32>
    %c0_i32_9 = arith.constant 0 : i32
    %23 = arith.cmpi slt, %16, %c0_i32_9 : i32
    %24 = vector.broadcast %23 : i1 to vector<1x256xi1>
    %25 = vector.broadcast %24 : vector<1x256xi1> to vector<1x256xi1>
    %26 = arith.xori %22, %25 : vector<1x256xi1>
    %27 = arith.andi %26, %20 : vector<1x256xi1>
    %28 = vector.broadcast %16 : i32 to vector<1x256xi32>
    %29 = arith.addi %18, %28 : vector<1x256xi32>
    %30 = arith.select %27, %29, %18 : vector<1x256xi1>, vector<1x256xi32>
    %c1_i32_10 = arith.constant 1 : i32
    %31 = vector.broadcast %c1_i32_10 : i32 to vector<1x256xi32>
    %32 = arith.cmpi sge, %30, %31 : vector<1x256xi32>
    %33 = arith.extui %32 : vector<1x256xi1> to vector<1x256xi32>
    %34 = arith.sitofp %33 : vector<1x256xi32> to vector<1x256xf32>
    %35 = arith.truncf %34 : vector<1x256xf32> to vector<1x256xbf16>
    %c15_i32 = arith.constant 15 : i32
    %36 = vector.broadcast %c15_i32 : i32 to vector<1x256xi32>
    %37 = arith.cmpi slt, %30, %36 : vector<1x256xi32>
    %38 = arith.extui %37 : vector<1x256xi1> to vector<1x256xi32>
    %39 = arith.sitofp %38 : vector<1x256xi32> to vector<1x256xf32>
    %40 = arith.truncf %39 : vector<1x256xf32> to vector<1x256xbf16>
    %cst_11 = arith.constant 0.000000e+00 : bf16
    %41 = vector.broadcast %cst_11 : bf16 to vector<2x1xbf16>
    %42 = vector.extract_strided_slice %13 {offsets = [0, 0], sizes = [2, 255], strides = [1, 1]} : vector<2x256xbf16> to vector<2x255xbf16>
    %43 = tpu.concatenate %41, %42 in 1 : vector<2x1xbf16>, vector<2x255xbf16> -> vector<2x256xbf16>
    %44 = vector.broadcast %35 : vector<1x256xbf16> to vector<2x256xbf16>
    %45 = arith.mulf %43, %44 : vector<2x256xbf16>
    %cst_12 = arith.constant 0.000000e+00 : bf16
    %46 = vector.broadcast %cst_12 : bf16 to vector<2x1xbf16>
    %47 = vector.extract_strided_slice %13 {offsets = [0, 1], sizes = [2, 255], strides = [1, 1]} : vector<2x256xbf16> to vector<2x255xbf16>
    %48 = tpu.concatenate %47, %46 in 1 : vector<2x255xbf16>, vector<2x1xbf16> -> vector<2x256xbf16>
    %49 = vector.broadcast %40 : vector<1x256xbf16> to vector<2x256xbf16>
    %50 = arith.mulf %48, %49 : vector<2x256xbf16>
    %cst_13 = arith.constant 0.000000e+00 : bf16
    %51 = vector.broadcast %cst_13 : bf16 to vector<2x16xbf16>
    %52 = vector.extract_strided_slice %45 {offsets = [0, 0], sizes = [2, 240], strides = [1, 1]} : vector<2x256xbf16> to vector<2x240xbf16>
    %53 = tpu.concatenate %51, %52 in 1 : vector<2x16xbf16>, vector<2x240xbf16> -> vector<2x256xbf16>
    %cst_14 = arith.constant 0.000000e+00 : bf16
    %54 = vector.broadcast %cst_14 : bf16 to vector<2x16xbf16>
    %55 = vector.extract_strided_slice %13 {offsets = [0, 0], sizes = [2, 240], strides = [1, 1]} : vector<2x256xbf16> to vector<2x240xbf16>
    %56 = tpu.concatenate %54, %55 in 1 : vector<2x16xbf16>, vector<2x240xbf16> -> vector<2x256xbf16>
    %cst_15 = arith.constant 0.000000e+00 : bf16
    %57 = vector.broadcast %cst_15 : bf16 to vector<2x16xbf16>
    %58 = vector.extract_strided_slice %50 {offsets = [0, 0], sizes = [2, 240], strides = [1, 1]} : vector<2x256xbf16> to vector<2x240xbf16>
    %59 = tpu.concatenate %57, %58 in 1 : vector<2x16xbf16>, vector<2x240xbf16> -> vector<2x256xbf16>
    %cst_16 = arith.constant 0.000000e+00 : bf16
    %60 = vector.broadcast %cst_16 : bf16 to vector<2x16xbf16>
    %61 = vector.extract_strided_slice %45 {offsets = [0, 16], sizes = [2, 240], strides = [1, 1]} : vector<2x256xbf16> to vector<2x240xbf16>
    %62 = tpu.concatenate %61, %60 in 1 : vector<2x240xbf16>, vector<2x16xbf16> -> vector<2x256xbf16>
    %cst_17 = arith.constant 0.000000e+00 : bf16
    %63 = vector.broadcast %cst_17 : bf16 to vector<2x16xbf16>
    %64 = vector.extract_strided_slice %13 {offsets = [0, 16], sizes = [2, 240], strides = [1, 1]} : vector<2x256xbf16> to vector<2x240xbf16>
    %65 = tpu.concatenate %64, %63 in 1 : vector<2x240xbf16>, vector<2x16xbf16> -> vector<2x256xbf16>
    %cst_18 = arith.constant 0.000000e+00 : bf16
    %66 = vector.broadcast %cst_18 : bf16 to vector<2x16xbf16>
    %67 = vector.extract_strided_slice %50 {offsets = [0, 16], sizes = [2, 240], strides = [1, 1]} : vector<2x256xbf16> to vector<2x240xbf16>
    %68 = tpu.concatenate %67, %66 in 1 : vector<2x240xbf16>, vector<2x16xbf16> -> vector<2x256xbf16>
    %69 = tpu.concatenate %53, %56, %59, %45, %13, %50, %62, %65, %68 in 0 : vector<2x256xbf16>, vector<2x256xbf16>, vector<2x256xbf16>, vector<2x256xbf16>, vector<2x256xbf16>, vector<2x256xbf16>, vector<2x256xbf16>, vector<2x256xbf16>, vector<2x256xbf16> -> vector<18x256xbf16>
    %c0_19 = arith.constant 0 : index
    %c0_20 = arith.constant 0 : index
    %70 = vector.load %arg4[%c0_19, %c0_20] : memref<4x18xbf16, #tpu.memory_space<vmem>>, vector<4x18xbf16>
    %cst_21 = arith.constant dense<0.000000e+00> : vector<4x256xf32>
    %71 = tpu.matmul %70, %69, %cst_21 {dimension_numbers = #tpu.dot_dimension_numbers<[1], [0], [0], [1], [0, 0, 1, 1], [], []>} : vector<4x18xbf16>, vector<18x256xbf16>, vector<4x256xf32> -> vector<4x256xf32>
    %c0_22 = arith.constant 0 : index
    %c0_23 = arith.constant 0 : index
    %72 = vector.load %arg5[%c0_22, %c0_23] : memref<4x1xf32, #tpu.memory_space<vmem>>, vector<4x1xf32>
    %73 = vector.broadcast %72 : vector<4x1xf32> to vector<4x256xf32>
    %74 = arith.addf %71, %73 : vector<4x256xf32>
    %75 = arith.negf %74 : vector<4x256xf32>
    %76 = math.exp %75 : vector<4x256xf32>
    %cst_24 = arith.constant 1.000000e+00 : f32
    %77 = vector.broadcast %cst_24 : f32 to vector<4x256xf32>
    %78 = arith.addf %77, %76 : vector<4x256xf32>
    %79 = arith.divf %77, %78 : vector<4x256xf32>
    %80 = arith.mulf %74, %79 : vector<4x256xf32>
    %81 = arith.extf %1 : vector<4x256xbf16> to vector<4x256xf32>
    %82 = arith.addf %80, %81 : vector<4x256xf32>
    %c0_25 = arith.constant 0 : index
    %c0_26 = arith.constant 0 : index
    %c0_27 = arith.constant 0 : index
    %83 = vector.load %arg6[%c0_25, %c0_26, %c0_27] : memref<1x4x256xf32, #tpu.memory_space<vmem>>, vector<1x4x256xf32>
    %84 = vector.shape_cast %83 : vector<1x4x256xf32> to vector<4x256xf32>
    %85 = vector.shape_cast %82 : vector<4x256xf32> to vector<1x4x256xf32>
    tpu.vector_store %arg6[%c0_25, %c0_26, %c0_27], %85 {strides = array<i32>} : memref<1x4x256xf32, #tpu.memory_space<vmem>>, vector<1x4x256xf32>,
    return
  }
  func.func @transform_0(%arg0: i32) -> (i32, i32, i32) {
    %c0_i32 = arith.constant 0 : i32
    %c0_i32_0 = arith.constant 0 : i32
    %c0_i32_1 = arith.constant 0 : i32
    return %arg0, %c0_i32, %c0_i32_0 : i32, i32, i32
  }
  func.func @transform_1(%arg0: i32) -> (i32, i32) {
    %c0_i32 = arith.constant 0 : i32
    %c0_i32_0 = arith.constant 0 : i32
    %c0_i32_1 = arith.constant 0 : i32
    return %c0_i32, %c0_i32_0 : i32, i32
  }
  func.func @transform_2(%arg0: i32) -> (i32, i32) {
    %c0_i32 = arith.constant 0 : i32
    %c0_i32_0 = arith.constant 0 : i32
    %c0_i32_1 = arith.constant 0 : i32
    return %c0_i32, %c0_i32_0 : i32, i32
  }
  func.func @transform_3(%arg0: i32) -> (i32, i32) {
    %c0_i32 = arith.constant 0 : i32
    %c0_i32_0 = arith.constant 0 : i32
    %c0_i32_1 = arith.constant 0 : i32
    return %c0_i32, %c0_i32_0 : i32, i32
  }
  func.func @transform_4(%arg0: i32) -> (i32, i32) {
    %c0_i32 = arith.constant 0 : i32
    %c0_i32_0 = arith.constant 0 : i32
    %c0_i32_1 = arith.constant 0 : i32
    return %c0_i32, %c0_i32_0 : i32, i32
  }
  func.func @transform_5(%arg0: i32) -> (i32, i32, i32) {
    %c0_i32 = arith.constant 0 : i32
    %c0_i32_0 = arith.constant 0 : i32
    %c0_i32_1 = arith.constant 0 : i32
    return %arg0, %c0_i32, %c0_i32_0 : i32, i32, i32
  }
}

</mosaic_0001>

<llo_original>
// kernel: tpu_custom_call.1
$region0: #{tpu_custom_call.1}
  #allocation0 [shape = 'u32[]', space=smem, size = 0x4, offset = 0x4, fixed_abs, tag = 'smem constant byte address 0x4 - core index']
  #allocation1 [shape = 'u32[144,128]{1,0:T(1,128)}', space=vmem, size = 0x12000, scoped, tag = 'internal scratch']
  %s0 = inlined_call_operand.vmem [shape: bf16[2,4,256], index: 0, kind: input, shape index: {}]
  %s1 = inlined_call_operand.vmem [shape: bf16[2,4], index: 1, kind: input, shape index: {}]
  %s2 = inlined_call_operand.vmem [shape: f32[2,1], index: 2, kind: input, shape index: {}]
  %s3 = inlined_call_operand.vmem [shape: bf16[4,18], index: 3, kind: input, shape index: {}]
  %s4 = inlined_call_operand.vmem [shape: f32[4,1], index: 4, kind: input, shape index: {}]
  %s5 = inlined_call_operand.hbm [shape: f32[2,4,256], index: 5, kind: output, shape index: {}]
  %s6 = sld [smem:[#allocation0]]
  $region53: #{tpu_custom_call.1} parent=0
    _
  %s8 = ssub.s32 1, %s6
  %s9 = scalar_select 0, %s8, %s6
  $region1: #{tpu_custom_call.1} parent=0
    #allocation2 [shape = 'u8[8192]{0}', space=vmem, size = 0x2000, scoped, tag = 'output window, operand 0']
    #allocation3 [shape = 's32[2]{0}', space=sflag, size = 0x8, scoped, tag = 'scoped memory for tpu_custom_call.1']
    %10 = vsyncpa [#allocation3], 0
    %s11 = scalar_lea.sflag [#allocation3], 1
    %12 = vsyncpa %s11, 0
    loop: start=0, step=1, limit=4
    $region2: #{tpu_custom_call.1} parent=1 // loop_pre_header
      _
    $region3: #{tpu_custom_call.1} parent=1 // loop_header
      %s14 = sphi 0, %s18
      %p15 = scmp.ge.s32.totalorder %s14, 4
      %s24 = sphi 0, %s26
      %s27 = sphi 0, %s24
      %s28 = sphi 0, %s27
      %s44 = sphi 0, %s28
      %s48 = sphi 0, %s48
      %s50 = sphi 0, %s48
      %s51 = sphi 0, %s50
      %s65 = sphi 0, %s51
      %s69 = sphi 0, %s69
      %s71 = sphi 0, %s69
      %s72 = sphi 0, %s71
      %s86 = sphi 0, %s72
      %s90 = sphi 0, %s90
      %s92 = sphi 0, %s90
      %s93 = sphi 0, %s92
      %s107 = sphi 0, %s93
      %s111 = sphi 0, %s111
      %s113 = sphi 0, %s111
      %s114 = sphi 0, %s113
      %s128 = sphi 0, %s114
      %s134 = sphi 0, %s136
      %s137 = sphi 0, %s134
      %s138 = sphi 0, %s137
      %s154 = sphi 0, %s138
    $region4: #{tpu_custom_call.1} parent=1 // loop_header_branch
      %17 = sbr.rel (%p15) target = $region8
    $region5: #{tpu_custom_call.1} parent=1 // loop_body
      %s19 = ssub.s32 %s14, 1
      %s20 = ssub.s32 %s14, 2
      %s21 = sadd.s32 %s14, 1
      %s22 = ssub.s32 %s14, %s21
      %p23 = scmp.eq.s32.totalorder %s22, 0
      %s25 = sadd.s32 %s24, 1
      %s26 = scalar_select %p23, %s24, %s25
      %p29 = pneg %p23
      %p30 = scmp.eq.s32.totalorder %s14, 1
      %p31 = por %p29, %p30
      %p32 = scmp.ne.s32.totalorder %s24, %s27
      %p33 = scmp.eq.s32.totalorder %s14, 0
      %p34 = por %p32, %p33
      %p35 = scmp.ne.s32.totalorder %s24, %s27
      %p36 = scmp.eq.s32.totalorder %s19, 1
      %p37 = por %p35, %p36
      %p38 = scmp.ne.s32.totalorder %s27, %s28
      %p39 = scmp.eq.s32.totalorder %s19, 0
      %p40 = por %p38, %p39
      %p41 = scmp.ne.s32.totalorder %s27, %s28
      %p42 = scmp.eq.s32.totalorder %s20, 1
      %p43 = por %p41, %p42
      %p45 = scmp.ne.s32.totalorder %s28, %s44
      %p46 = scmp.eq.s32.totalorder %s20, 0
      %p47 = por %p45, %p46
      %s49 = sadd.s32 %s48, 1
      %p52 = scmp.eq.s32.totalorder %s14, 1
      %p53 = scmp.ne.s32.totalorder %s48, %s50
      %p54 = scmp.eq.s32.totalorder %s14, 0
      %p55 = por %p53, %p54
      %p56 = scmp.ne.s32.totalorder %s48, %s50
      %p57 = scmp.eq.s32.totalorder %s19, 1
      %p58 = por %p56, %p57
      %p59 = scmp.ne.s32.totalorder %s50, %s51
      %p60 = scmp.eq.s32.totalorder %s19, 0
      %p61 = por %p59, %p60
      %p62 = scmp.ne.s32.totalorder %s50, %s51
      %p63 = scmp.eq.s32.totalorder %s20, 1
      %p64 = por %p62, %p63
      %p66 = scmp.ne.s32.totalorder %s51, %s65
      %p67 = scmp.eq.s32.totalorder %s20, 0
      %p68 = por %p66, %p67
      %s70 = sadd.s32 %s69, 1
      %p73 = scmp.eq.s32.totalorder %s14, 1
      %p74 = scmp.ne.s32.totalorder %s69, %s71
      %p75 = scmp.eq.s32.totalorder %s14, 0
      %p76 = por %p74, %p75
      %p77 = scmp.ne.s32.totalorder %s69, %s71
      %p78 = scmp.eq.s32.totalorder %s19, 1
      %p79 = por %p77, %p78
      %p80 = scmp.ne.s32.totalorder %s71, %s72
      %p81 = scmp.eq.s32.totalorder %s19, 0
      %p82 = por %p80, %p81
      %p83 = scmp.ne.s32.totalorder %s71, %s72
      %p84 = scmp.eq.s32.totalorder %s20, 1
      %p85 = por %p83, %p84
      %p87 = scmp.ne.s32.totalorder %s72, %s86
      %p88 = scmp.eq.s32.totalorder %s20, 0
      %p89 = por %p87, %p88
      %s91 = sadd.s32 %s90, 1
      %p94 = scmp.eq.s32.totalorder %s14, 1
      %p95 = scmp.ne.s32.totalorder %s90, %s92
      %p96 = scmp.eq.s32.totalorder %s14, 0
      %p97 = por %p95, %p96
      %p98 = scmp.ne.s32.totalorder %s90, %s92
      %p99 = scmp.eq.s32.totalorder %s19, 1
      %p100 = por %p98, %p99
      %p101 = scmp.ne.s32.totalorder %s92, %s93
      %p102 = scmp.eq.s32.totalorder %s19, 0
      %p103 = por %p101, %p102
      %p104 = scmp.ne.s32.totalorder %s92, %s93
      %p105 = scmp.eq.s32.totalorder %s20, 1
      %p106 = por %p104, %p105
      %p108 = scmp.ne.s32.totalorder %s93, %s107
      %p109 = scmp.eq.s32.totalorder %s20, 0
      %p110 = por %p108, %p109
      %s112 = sadd.s32 %s111, 1
      %p115 = scmp.eq.s32.totalorder %s14, 1
      %p116 = scmp.ne.s32.totalorder %s111, %s113
      %p117 = scmp.eq.s32.totalorder %s14, 0
      %p118 = por %p116, %p117
      %p119 = scmp.ne.s32.totalorder %s111, %s113
      %p120 = scmp.eq.s32.totalorder %s19, 1
      %p121 = por %p119, %p120
      %p122 = scmp.ne.s32.totalorder %s113, %s114
      %p123 = scmp.eq.s32.totalorder %s19, 0
      %p124 = por %p122, %p123
      %p125 = scmp.ne.s32.totalorder %s113, %s114
      %p126 = scmp.eq.s32.totalorder %s20, 1
      %p127 = por %p125, %p126
      %p129 = scmp.ne.s32.totalorder %s114, %s128
      %p130 = scmp.eq.s32.totalorder %s20, 0
      %p131 = por %p129, %p130
      %s132 = ssub.s32 %s14, %s21
      %p133 = scmp.eq.s32.totalorder %s132, 0
      %s135 = sadd.s32 %s134, 1
      %s136 = scalar_select %p133, %s134, %s135
      %p139 = pneg %p133
      %p140 = scmp.eq.s32.totalorder %s14, 1
      %p141 = por %p139, %p140
      %p142 = scmp.ne.s32.totalorder %s134, %s137
      %p143 = scmp.eq.s32.totalorder %s14, 0
      %p144 = por %p142, %p143
      %p145 = scmp.ne.s32.totalorder %s134, %s137
      %p146 = scmp.eq.s32.totalorder %s19, 1
      %p147 = por %p145, %p146
      %p148 = scmp.ne.s32.totalorder %s137, %s138
      %p149 = scmp.eq.s32.totalorder %s19, 0
      %p150 = por %p148, %p149
      %p151 = scmp.ne.s32.totalorder %s137, %s138
      %p152 = scmp.eq.s32.totalorder %s20, 1
      %p153 = por %p151, %p152
      %p155 = scmp.ne.s32.totalorder %s138, %s154
      %p156 = scmp.eq.s32.totalorder %s20, 0
      %p157 = por %p155, %p156
      %p158 = scmp.le.s32.totalorder 1, %s14
      %p159 = scmp.lt.s32.totalorder %s14, 3
      %p160 = pnand %p158, %p159
      %p161 = pneg %p160
      // Predicated region
      $region9: #{tpu_custom_call.1} parent=5 // pred_check
        _
      $region10: #{tpu_custom_call.1} parent=5 // pred_check_branch
        %163 = sbr.rel (%p160) target = $region12
      $region11: #{tpu_custom_call.1} parent=5 // pred_region
        %s164 = ssub.s32 %s14, 1
        // Predicated region
        $region13: #{tpu_custom_call.1} parent=11 // pred_check
          %p165 = pneg %p61
        $region14: #{tpu_custom_call.1} parent=11 // pred_check_branch
          %167 = sbr.rel (%p165) target = $region16
        $region15: #{tpu_custom_call.1} parent=11 // pred_region
          _
        $region16: #{tpu_custom_call.1} parent=11 // pred_fallthru
          _
        // Predicated region
        $region17: #{tpu_custom_call.1} parent=11 // pred_check
          %p168 = pneg %p82
        $region18: #{tpu_custom_call.1} parent=11 // pred_check_branch
          %170 = sbr.rel (%p168) target = $region20
        $region19: #{tpu_custom_call.1} parent=11 // pred_region
          _
        $region20: #{tpu_custom_call.1} parent=11 // pred_fallthru
          _
        // Predicated region
        $region21: #{tpu_custom_call.1} parent=11 // pred_check
          %p171 = pneg %p103
        $region22: #{tpu_custom_call.1} parent=11 // pred_check_branch
          %173 = sbr.rel (%p171) target = $region24
        $region23: #{tpu_custom_call.1} parent=11 // pred_region
          _
        $region24: #{tpu_custom_call.1} parent=11 // pred_fallthru
          _
        // Predicated region
        $region25: #{tpu_custom_call.1} parent=11 // pred_check
          %p174 = pneg %p124
        $region26: #{tpu_custom_call.1} parent=11 // pred_check_branch
          %176 = sbr.rel (%p174) target = $region28
        $region27: #{tpu_custom_call.1} parent=11 // pred_region
          _
        $region28: #{tpu_custom_call.1} parent=11 // pred_fallthru
          _
      $region12: #{tpu_custom_call.1} parent=5 // pred_fallthru
        _
      %p177 = scmp.lt.s32.totalorder %s14, 2
      // Predicated region
      $region29: #{tpu_custom_call.1} parent=5 // pred_check
        %p178 = pneg %p177
      $region30: #{tpu_custom_call.1} parent=5 // pred_check_branch
        %180 = sbr.rel (%p178) target = $region32
      $region31: #{tpu_custom_call.1} parent=5 // pred_region
        // Predicated region
        $region33: #{tpu_custom_call.1} parent=31 // pred_check
          %p181 = pneg %p34
        $region34: #{tpu_custom_call.1} parent=31 // pred_check_branch
          %183 = sbr.rel (%p181) target = $region36
        $region35: #{tpu_custom_call.1} parent=31 // pred_region
          %p184 = scmp.lt.s32.totalorder %s14, 1
          %s185 = scalar_select %p184, %s14, 1
          %s186 = smul.addr %s185, 2
          %s187 = smul.addr %s186, 2
          %s188 = scalar_lea.vmem %s0, %s187
        $region36: #{tpu_custom_call.1} parent=31 // pred_fallthru
          _
      $region32: #{tpu_custom_call.1} parent=5 // pred_fallthru
        _
      %p189 = scmp.le.s32.totalorder 1, %s14
      %p190 = scmp.lt.s32.totalorder %s14, 3
      %p191 = pnand %p189, %p190
      %p192 = pneg %p191
      // Predicated region
      $region37: #{tpu_custom_call.1} parent=5 // pred_check
        _
      $region38: #{tpu_custom_call.1} parent=5 // pred_check_branch
        %194 = sbr.rel (%p191) target = $region40
      $region39: #{tpu_custom_call.1} parent=5 // pred_region
        %s195 = ssub.s32 %s14, 1
        %p196 = scmp.lt.s32.totalorder %s19, 1
        %s197 = scalar_select %p196, %s19, 1
        %s198 = smul.addr %s197, 2
        %s199 = smul.addr %s198, 2
        %s200 = scalar_lea.vmem %s0, %s199
        %p201 = pneg %p40
        %p202 = pneg %p37
        %p203 = pneg %p61
        %p204 = pneg %p58
        %p205 = pneg %p82
        %p206 = pneg %p79
        %p207 = pneg %p103
        %p208 = pneg %p100
        %p209 = pneg %p124
        %p210 = pneg %p121
        %p211 = pneg %p150
        %p212 = pneg %p147
        %s213 = sand.u32 %s137, 1
        %s214 = scalar_lea.sflag [#allocation3], %s213
        %s215 = sand.u32 %s137, 1
        %s216 = smul.addr %s215, 8
        %s217 = scalar_lea.vmem [#allocation2], %s216
        %p218 = scmp.lt.s32.totalorder %s19, 1
        %s219 = scalar_select %p218, %s19, 1
        %s220 = smul.addr %s219, 2
        %s221 = smul.addr %s220, 2
        %s222 = scalar_lea.vmem %s0, %s221
        %v224 = vld [vmem:[%s222] sm:$0xf]
        %v225 = vld [vmem:[%s1] sm:$0x1]
        %v226 = vld [vmem:[%s2] sm:$0x3]
        %228 = vset.pattern.permute.xlu0 0
        %229 = vperm.xlu0 %228, %v226
        %v230 = vpop.permute.xlu0 %229
        %v234 = vunpack.c.l.s4 1983009808
        %v235 = vunpack.c.0.s8 %v234
        %v236 = vlaneseq
        %v237 = vshrl.u32 %v236, 7
        %v238 = vsub.s32 %v235, %v237
        %v239 = vrot.slane %v224, %v238
        %v240 = vcombine.high %v239, %v239
        %vm241 = vcmask 31744
        %v243 = vsel %vm241, %v225, 0
        %vm245 = vcmask 1041408
        %v247 = vsel %vm245, %v239, 0
        %v250 = vsel %vm245, %v240, 0
        %252 = vmatprep.subr.bf16.mxu0 %v250
        %253 = vmatpush1.bf16.msra.mxu0 %v247
        %254 = vmatprep.subr.bf16.mxu0 0
        %255 = vmatpush1.bf16.msra.mxu0 0
        %256 = vmatprep.subr.bf16.mxu0 0
        %257 = vmatpush1.bf16.msra.mxu0 0
        %258 = vmatprep.subr.bf16.mxu0 0
        %259 = vmatpush1.bf16.msra.mxu0 0
        %260 = vmatprep.subr.bf16.mxu0 0
        %261 = vmatpush1.bf16.msra.mxu0 0
        %262 = vmatprep.subr.bf16.mxu0 0
        %263 = vmatpush1.bf16.msra.mxu0 0
        %264 = vmatprep.subr.bf16.mxu0 0
        %265 = vmatpush1.bf16.msra.mxu0 0
        %266 = vmatprep.subr.bf16.mxu0 0
        %267 = vmatpush1.bf16.msra.mxu0 0
        %268 = vmatprep.subr.bf16.mxu0 0
        %269 = vmatpush1.bf16.msra.mxu0 0
        %270 = vmatprep.subr.bf16.mxu0 0
        %271 = vmatpush1.bf16.msra.mxu0 0
        %272 = vmatprep.subr.bf16.mxu0 0
        %273 = vmatpush1.bf16.msra.mxu0 0
        %274 = vmatprep.subr.bf16.mxu0 0
        %275 = vmatpush1.bf16.msra.mxu0 0
        %276 = vmatprep.subr.bf16.mxu0 0
        %277 = vmatpush1.bf16.msra.mxu0 0
        %278 = vmatprep.subr.bf16.mxu0 0
        %279 = vmatpush1.bf16.msra.mxu0 0
        %280 = vmatprep.subr.bf16.mxu0 0
        %281 = vmatpush1.bf16.msra.mxu0 0
        %282 = vmatprep.subr.bf16.mxu0 0
        %283 = vmatpush1.bf16.msra.mxu0 0
        %284 = vmatprep.mubr.bf16.mxu0 0
        %285 = vmatmul.mubr.bf16.gmra.mrb[0].mxu0 %v243
        %v286 = vpop.f32.mrb[0].mxu0
        %v287 = vadd.f32 %v230, %v286
        %v288 = vpop.f32.mrb[0].mxu0
        %v289 = vadd.f32 %v230, %v288
        %v290 = vpop.f32.mrb[0].mxu0
        %v291 = vpop.f32.mrb[0].mxu0
        %292 = vdwg.mxu0
        %v293 = vxor.u32 %v287, 2147483648
        %v294 = vxor.u32 %v289, 2147483648
        %v295 = vmul.f32 %v293, 1.442695
        %v296 = vpow.pop %v295
        %v297 = vmul.f32 %v294, 1.442695
        %v298 = vpow.pop %v297
        %v299 = vadd.f32 %v296, 1.0
        %v300 = vadd.f32 %v298, 1.0
        %v301 = vrcp.pop %v299
        %v302 = vmul.f32 1.0, %v301
        %v303 = vrcp.pop %v300
        %v304 = vmul.f32 1.0, %v303
        %v305 = vmul.f32 %v287, %v302
        %v306 = vmul.f32 %v289, %v304
        %v307 = vpack.c.bf16 %v305, %v305
        %v308 = vpack.c.bf16 %v306, %v306
        %v309 = vlaneseq
        %v310 = vand.u32 %v309, 127
        %v311 = vadd.s32 %v310, 128
        %vm312 = vcmp.lt.s32.totalorder %v310, 0
        %v313 = vsub.s32 0, %v310
        %v314 = vsel %vm312, %v313, %v310
        %v315 = vshrl.u32 %v314, 4
        %v316 = vand.u32 %v314, 15
        %v317 = vsub.s32 0, %v316
        %v318 = vsel %vm312, %v317, %v316
        %vm319 = vcmp.lt.s32.totalorder %v311, 0
        %v320 = vsub.s32 0, %v311
        %v321 = vsel %vm319, %v320, %v311
        %v322 = vshrl.u32 %v321, 4
        %v323 = vand.u32 %v321, 15
        %v324 = vsub.s32 0, %v323
        %v325 = vsel %vm319, %v324, %v323
        %vm326 = vcmp.ne.s32.totalorder %v318, 0
        %vm327 = vcmp.ne.s32.totalorder %v325, 0
        %vm328 = vcmp.lt.s32.totalorder %v318, 0
        %vm329 = vcmp.lt.s32.totalorder %v325, 0
        %vm330 = vmand %vm328, %vm326
        %vm331 = vmand %vm329, %vm327
        %v332 = vadd.s32 %v318, 16
        %v333 = vadd.s32 %v325, 16
        %v334 = vsel %vm330, %v332, %v318
        %v335 = vsel %vm331, %v333, %v325
        %vm336 = vcmp.ge.s32.totalorder %v334, 1
        %vm337 = vcmp.ge.s32.totalorder %v335, 1
        %v338 = vsel %vm336, 1, 0
        %v339 = vsel %vm337, 1, 0
        %v340 = vcvt.s32.f32 %v338
        %v341 = vcvt.s32.f32 %v339
        %v342 = vpack.c.bf16 %v340, %v340
        %v343 = vpack.c.bf16 %v341, %v341
        %vm344 = vcmp.lt.s32.totalorder %v334, 15
        %vm345 = vcmp.lt.s32.totalorder %v335, 15
        %v346 = vsel %vm344, 1, 0
        %v347 = vsel %vm345, 1, 0
        %v348 = vcvt.s32.f32 %v346
        %v349 = vcvt.s32.f32 %v347
        %v350 = vpack.c.bf16 %v348, %v348
        %v351 = vpack.c.bf16 %v349, %v349
        %354 = vrot.lane.b32.xlu0 %v307, 1
        %v355 = vpop.permute.xlu0 %354
        %356 = vrot.lane.b32.xlu0 %v308, 1
        %v357 = vpop.permute.xlu0 %356
        %vm358 = vcmask 7168
        %v359 = vsel %vm358, %v355, %v357
        %vm361 = vcmask 7168
        %v364 = vsel %vm361, 0, %v355
        %v366 = vmul.bf16 %v364, %v342
        %v367 = vmul.bf16 %v359, %v343
        %368 = vrot.lane.b32.xlu0 %v307, 127
        %v369 = vpop.permute.xlu0 %368
        %370 = vrot.lane.b32.xlu0 %v308, 127
        %v371 = vpop.permute.xlu0 %370
        %vm372 = vcmask 1039360
        %v373 = vsel %vm372, %v369, %v371
        %vm375 = vcmask 1039360
        %v377 = vsel %vm375, %v371, 0
        %v379 = vmul.bf16 %v373, %v350
        %v380 = vmul.bf16 %v377, %v351
        %383 = vrot.lane.b32.xlu0 %v366, 16
        %v384 = vpop.permute.xlu0 %383
        %385 = vrot.lane.b32.xlu0 %v367, 16
        %v386 = vpop.permute.xlu0 %385
        %vm387 = vcmask 130048
        %v388 = vsel %vm387, %v384, %v386
        %vm389 = vcmask 130048
        %v391 = vsel %vm389, 0, %v384
        %392 = vrot.lane.b32.xlu0 %v307, 16
        %v393 = vpop.permute.xlu0 %392
        %394 = vrot.lane.b32.xlu0 %v308, 16
        %v395 = vpop.permute.xlu0 %394
        %v396 = vsel %vm387, %v393, %v395
        %v398 = vsel %vm389, 0, %v393
        %401 = vrot.lane.b32.xlu0 %v379, 16
        %v402 = vpop.permute.xlu0 %401
        %403 = vrot.lane.b32.xlu0 %v380, 16
        %v404 = vpop.permute.xlu0 %403
        %v405 = vsel %vm387, %v402, %v404
        %v407 = vsel %vm389, 0, %v402
        %408 = vrot.lane.b32.xlu0 %v366, 112
        %v409 = vpop.permute.xlu0 %408
        %410 = vrot.lane.b32.xlu0 %v367, 112
        %v411 = vpop.permute.xlu0 %410
        %vm412 = vcmask 916480
        %v413 = vsel %vm412, %v409, %v411
        %vm414 = vcmask 916480
        %v416 = vsel %vm414, %v411, 0
        %417 = vrot.lane.b32.xlu0 %v307, 112
        %v418 = vpop.permute.xlu0 %417
        %419 = vrot.lane.b32.xlu0 %v308, 112
        %v420 = vpop.permute.xlu0 %419
        %v421 = vsel %vm412, %v418, %v420
        %v423 = vsel %vm414, %v420, 0
        %424 = vrot.lane.b32.xlu0 %v379, 112
        %v425 = vpop.permute.xlu0 %424
        %426 = vrot.lane.b32.xlu0 %v380, 112
        %v427 = vpop.permute.xlu0 %426
        %v428 = vsel %vm412, %v425, %v427
        %v430 = vsel %vm414, %v427, 0
        %v432 = vrot.slane %v398, 7
        %v433 = vrot.slane %v396, 7
        %v435 = vrot.slane %v407, 6
        %v436 = vrot.slane %v405, 6
        %v437 = vrot.slane %v366, 5
        %v438 = vrot.slane %v367, 5
        %v439 = vrot.slane %v307, 4
        %v440 = vrot.slane %v308, 4
        %v441 = vrot.slane %v379, 3
        %v442 = vrot.slane %v380, 3
        %v444 = vrot.slane %v413, 2
        %v445 = vrot.slane %v416, 2
        %v447 = vrot.slane %v421, 1
        %v448 = vrot.slane %v423, 1
        %vm449 = vcmask 1040384
        %v451 = vsel %vm449, %v391, %v432
        %v454 = vsel %vm449, %v388, %v433
        %v456 = vsel %vm245, %v451, %v435
        %v458 = vsel %vm245, %v454, %v436
        %vm459 = vcmask 1042432
        %v461 = vsel %vm459, %v456, %v437
        %v463 = vsel %vm459, %v458, %v438
        %vm464 = vcmask 1043456
        %v466 = vsel %vm464, %v461, %v439
        %v468 = vsel %vm464, %v463, %v440
        %vm469 = vcmask 1044480
        %v471 = vsel %vm469, %v466, %v441
        %v473 = vsel %vm469, %v468, %v442
        %vm474 = vcmask 1045504
        %v476 = vsel %vm474, %v471, %v444
        %v478 = vsel %vm474, %v473, %v445
        %vm479 = vcmask 1046528
        %v481 = vsel %vm479, %v476, %v447
        %v484 = vsel %vm479, %v478, %v448
        %v486 = vld [vmem:[%s3] sm:$0x3]
        %v487 = vld [vmem:[%s4] sm:$0xf]
        %489 = vset.pattern.permute.xlu0 0
        %490 = vperm.xlu0 %489, %v487
        %v491 = vpop.permute.xlu0 %490
        %vm493 = vcmask 146432
        %v495 = vsel %vm493, %v486, 0
        %v498 = vsel %vm449, %v428, 0
        %v500 = vsel %vm449, %v430, 0
        %502 = vmatprep.subr.bf16.mxu0 %v484
        %503 = vmatpush1.bf16.msra.mxu0 %v481
        %504 = vmatprep.subr.bf16.mxu0 %v500
        %505 = vmatpush1.bf16.msra.mxu0 %v498
        %506 = vmatprep.subr.bf16.mxu0 0
        %507 = vmatpush1.bf16.msra.mxu0 0
        %508 = vmatprep.subr.bf16.mxu0 0
        %509 = vmatpush1.bf16.msra.mxu0 0
        %510 = vmatprep.subr.bf16.mxu0 0
        %511 = vmatpush1.bf16.msra.mxu0 0
        %512 = vmatprep.subr.bf16.mxu0 0
        %513 = vmatpush1.bf16.msra.mxu0 0
        %514 = vmatprep.subr.bf16.mxu0 0
        %515 = vmatpush1.bf16.msra.mxu0 0
        %516 = vmatprep.subr.bf16.mxu0 0
        %517 = vmatpush1.bf16.msra.mxu0 0
        %518 = vmatprep.subr.bf16.mxu0 0
        %519 = vmatpush1.bf16.msra.mxu0 0
        %520 = vmatprep.subr.bf16.mxu0 0
        %521 = vmatpush1.bf16.msra.mxu0 0
        %522 = vmatprep.subr.bf16.mxu0 0
        %523 = vmatpush1.bf16.msra.mxu0 0
        %524 = vmatprep.subr.bf16.mxu0 0
        %525 = vmatpush1.bf16.msra.mxu0 0
        %526 = vmatprep.subr.bf16.mxu0 0
        %527 = vmatpush1.bf16.msra.mxu0 0
        %528 = vmatprep.subr.bf16.mxu0 0
        %529 = vmatpush1.bf16.msra.mxu0 0
        %530 = vmatprep.subr.bf16.mxu0 0
        %531 = vmatpush1.bf16.msra.mxu0 0
        %532 = vmatprep.subr.bf16.mxu0 0
        %533 = vmatpush1.bf16.msra.mxu0 0
        %534 = vmatprep.mubr.bf16.mxu0 0
        %535 = vmatmul.mubr.bf16.gmra.mrb[0].mxu0 %v495
        %v536 = vpop.f32.mrb[0].mxu0
        %v537 = vadd.f32 %v491, %v536
        %v538 = vpop.f32.mrb[0].mxu0
        %v539 = vadd.f32 %v491, %v538
        %v540 = vpop.f32.mrb[0].mxu0
        %v541 = vpop.f32.mrb[0].mxu0
        %542 = vdwg.mxu0
        %v543 = vxor.u32 %v537, 2147483648
        %v544 = vxor.u32 %v539, 2147483648
        %v545 = vmul.f32 %v543, 1.442695
        %v546 = vpow.pop %v545
        %v547 = vmul.f32 %v544, 1.442695
        %v548 = vpow.pop %v547
        %v549 = vadd.f32 %v546, 1.0
        %v550 = vadd.f32 %v548, 1.0
        %v551 = vrcp.pop %v549
        %v552 = vmul.f32 1.0, %v551
        %v553 = vrcp.pop %v550
        %v554 = vmul.f32 1.0, %v553
        %v555 = vmul.f32 %v537, %v552
        %v556 = vmul.f32 %v539, %v554
        %v557 = vunpack.c.l.bf16 %v224
        %v559 = vcombine.high %v557, %v557
        %v561 = vadd.f32 %v555, %v557
        %v562 = vadd.f32 %v556, %v559
        %v565 = vcombine.low %v561, %v562
        %567 = vst [vmem:[%s217] sm:$0xff] %v565
        %s568 = sand.u32 %s137, 1
        %s569 = scalar_lea.sflag [#allocation3], %s568
        %s570 = sand.u32 %s137, 1
        %s571 = smul.addr %s570, 8
        %s572 = scalar_lea.vmem [#allocation2], %s571
        // Predicated region
        $region41: #{tpu_custom_call.1} parent=39 // pred_check
          %p573 = pneg %p147
        $region42: #{tpu_custom_call.1} parent=39 // pred_check_branch
          %575 = sbr.rel (%p573) target = $region44
        $region43: #{tpu_custom_call.1} parent=39 // pred_region
          %s577 = ssub.s32 128, 128
          %578 = vsyncadd %s569, %s577
          %s579 = smul.addr %s19, 2
          %s580 = smul.addr %s579, 64
          %s581 = scalar_lea.hbm %s5, %s580
          %s583 = sshll.u32 %s572, 4
          %s584 = int_to_ptr.vmem [resolvable:$true] %s583
          %586 = dma.vmem_to_hbm [thread:$0]  %s584, 128, %s581, %s569
        $region44: #{tpu_custom_call.1} parent=39 // pred_fallthru
          _
      $region40: #{tpu_custom_call.1} parent=5 // pred_fallthru
        _
      %p587 = scmp.le.s32.totalorder 2, %s14
      // Predicated region
      $region45: #{tpu_custom_call.1} parent=5 // pred_check
        %p588 = pneg %p587
      $region46: #{tpu_custom_call.1} parent=5 // pred_check_branch
        %590 = sbr.rel (%p588) target = $region48
      $region47: #{tpu_custom_call.1} parent=5 // pred_region
        %s591 = ssub.s32 %s14, 2
        // Predicated region
        $region49: #{tpu_custom_call.1} parent=47 // pred_check
          %p592 = pneg %p153
        $region50: #{tpu_custom_call.1} parent=47 // pred_check_branch
          %594 = sbr.rel (%p592) target = $region52
        $region51: #{tpu_custom_call.1} parent=47 // pred_region
          %s595 = sand.u32 %s138, 1
          %s596 = scalar_lea.sflag [#allocation3], %s595
          %s597 = sand.u32 %s138, 1
          %s598 = smul.addr %s597, 8
          %s599 = scalar_lea.vmem [#allocation2], %s598
          %600 = dma.done %s596, 128
        $region52: #{tpu_custom_call.1} parent=47 // pred_fallthru
          _
      $region48: #{tpu_custom_call.1} parent=5 // pred_fallthru
        _
    $region6: #{tpu_custom_call.1} parent=1 // loop_footer
      %s18 = sadd.s32 1, %s14
    $region7: #{tpu_custom_call.1} parent=1 // loop_footer_branch
      %13 = sbr.rel target = $region3
    $region8: #{tpu_custom_call.1} parent=1 // loop_exit
      _
    %601 = vsyncpa [#allocation3], 1
    %s602 = scalar_lea.sflag [#allocation3], 1
    %603 = vsyncpa %s602, 1

</llo_original>
